<compile_context>
chip_gen: v5e
topology: v5e:2x2
jax: 0.10.0
libtpu: 0.0.40
codegen_flags: <defaults>
</compile_context>

<pallas_src>
import functools

import jax
import jax.numpy as jnp
from jax import lax
from jax.experimental import pallas as pl
from jax.experimental.pallas import tpu as pltpu

LANES = 128
# (4096, 128) f32 block = 2 MiB per input stream per grid step; multiple of 32 so
# bf16 / int8 inputs also satisfy their sublane-tiling constraints.
BLOCK_ROWS_MAX = 4096
# Padding logit for the (rare) lane-unaligned tail.  With target 0 this gives
# bce == 0 exactly (exp underflows to 0, log1p(0) == 0) -> exactly zero loss, so
# no mask is needed anywhere.  -1e4 stays finite even in bf16/fp16.
PAD_LOGIT = -1.0e4


def _focal_kernel(x_ref, t_ref, out_ref, acc_ref, *, alpha, gamma,
                  block_rows, acc_rows):
    i = pl.program_id(1)  # block ("arbitrary" / reduction) axis

    @pl.when(i == 0)
    def _():
        acc_ref[...] = jnp.zeros_like(acc_ref)

    # Upcast in VMEM; HBM streams stay in their source dtype (bf16 inputs halve
    # the HBM traffic of this mem-bound kernel).
    x = x_ref[...].astype(jnp.float32)
    t = t_ref[...].astype(jnp.float32)

    # Numerically stable BCE-with-logits, identical to
    # F.binary_cross_entropy_with_logits(reduction='none').
    bce = jnp.maximum(x, 0.0) - x * t + jnp.log1p(jnp.exp(-jnp.abs(x)))
    # Keep the module's exact p_t = exp(-bce) (also correct for soft targets).
    # NOTE: for hard {0,1} targets one exp could be traded for a near-free vrcp,
    # but that changes semantics for soft labels, so it is intentionally omitted.
    p_t = jnp.exp(-bce)
    q = 1.0 - p_t

    # Trace-time specialization of the focal power term (avoid exp/log pow on EUP).
    g = float(gamma)
    if g == 0.0:
        focal = jnp.ones_like(q)
    elif g == 1.0:
        focal = q
    elif g == 2.0:
        focal = q * q
    elif g.is_integer():
        focal = lax.integer_pow(q, int(g))
    else:
        focal = q ** g

    loss = alpha * focal * bce

    # Pure VPU adds in the steady state; no cross-lane reductions per step.
    if block_rows == acc_rows:
        acc_ref[...] += loss
    else:  # full-extent block whose row count is not a multiple of 8 (tiny inputs)
        acc_ref[0:block_rows, :] += loss

    @pl.when(i == pl.num_programs(1) - 1)
    def _():
        # Fold the (acc_rows, 128) accumulator into an (8, 128) per-core partial.
        out_ref[0] = acc_ref[...].reshape(acc_rows // 8, 8, LANES).sum(axis=0)


def _device_kind() -> str:
    try:
        return jax.devices()[0].device_kind.lower()
    except Exception:  # pragma: no cover - be conservative if the query fails
        return ""


def _tensorcores_per_chip(kind: str) -> int:
    # Megacore chips (2 TensorCores behind one logical device): v4, v5p, v7x.
    if ("v4" in kind) or ("v5p" in kind) or ("7" in kind):
        return 2
    return 1


@functools.partial(jax.jit, static_argnames=("alpha", "gamma", "reduction"))
def focal_loss(logits, targets, *, alpha=1.0, gamma=2.0, reduction="mean"):
    assert logits.shape == targets.shape
    n = int(logits.size)

    x_flat = logits.reshape(-1)
    t_flat = targets.reshape(-1)

    # ---- lane alignment -----------------------------------------------------
    rem = n % LANES
    if rem:
        # One small pad to the next multiple of 128.  The pad values produce
        # exactly-zero loss, so nothing downstream needs a mask.
        pad = LANES - rem
        x_flat = jnp.pad(x_flat, (0, pad), constant_values=PAD_LOGIT)
        t_flat = jnp.pad(t_flat, (0, pad), constant_values=0)
    rows = (n + (LANES - rem) % LANES) // LANES

    # ---- blocking -----------------------------------------------------------
    if rows <= BLOCK_ROWS_MAX:
        block_rows = rows          # full-extent block: always a legal tile shape
        main_blocks = 1
        main_rows = rows
    else:
        block_rows = BLOCK_ROWS_MAX
        main_blocks = rows // block_rows
        main_rows = main_blocks * block_rows
    acc_rows = -(-block_rows // 8) * 8  # accumulator rows rounded up to 8

    # ---- TensorCore split (only where it pays and costs no phantom blocks) ---
    kind = _device_kind()
    if _tensorcores_per_chip(kind) == 2 and main_blocks >= 2 and main_blocks % 2 == 0:
        nc = 2
    else:
        nc = 1
    blocks_per_core = main_blocks // nc

    if nc == 2 and ("7" in kind) and hasattr(pltpu, "CORE_PARALLEL"):
        dim_sems = (pltpu.CORE_PARALLEL, pltpu.ARBITRARY)   # explicit cross-TC split
    else:
        dim_sems = ("parallel", "arbitrary")

    # Free (row-major bitcast) reshape to a lane-dense 2-D slab; no data movement.
    x2 = x_flat.reshape(rows, LANES)
    t2 = t_flat.reshape(rows, LANES)

    kernel = functools.partial(
        _focal_kernel,
        alpha=float(alpha),
        gamma=float(gamma),
        block_rows=block_rows,
        acc_rows=acc_rows,
    )

    bpc = blocks_per_core
    in_map = lambda c, i: (c * bpc + i, 0)

    partials = pl.pallas_call(
        kernel,
        out_shape=jax.ShapeDtypeStruct((nc, 8, LANES), jnp.float32),
        grid_spec=pltpu.PrefetchScalarGridSpec(
            num_scalar_prefetch=0,
            grid=(nc, blocks_per_core),
            in_specs=[
                pl.BlockSpec((block_rows, LANES), in_map),
                pl.BlockSpec((block_rows, LANES), in_map),
            ],
            out_specs=pl.BlockSpec((1, 8, LANES), lambda c, i: (c, 0, 0)),
            scratch_shapes=[pltpu.VMEM((acc_rows, LANES), jnp.float32)],
        ),
        compiler_params=pltpu.CompilerParams(
            dimension_semantics=dim_sems,
        ),
    )(x2, t2)

    total = jnp.sum(partials)

    # ---- tiny jnp epilogue for the (< one block) leftover rows ---------------
    if main_rows < rows:
        xt = x_flat[main_rows * LANES:].astype(jnp.float32)
        tt = t_flat[main_rows * LANES:].astype(jnp.float32)
        bce_t = jnp.maximum(xt, 0.0) - xt * tt + jnp.log1p(jnp.exp(-jnp.abs(xt)))
        p_t_t = jnp.exp(-bce_t)
        total = total + jnp.sum(float(alpha) * (1.0 - p_t_t) ** float(gamma) * bce_t)

    if reduction == "mean":
        return total / jnp.float32(n)
    return total


def _focal_loss_ref(logits, targets, alpha=1.0, gamma=2.0, reduction="mean"):
    x = logits.astype(jnp.float32)
    t = targets.astype(jnp.float32)
    bce = jnp.maximum(x, 0.0) - x * t + jnp.log1p(jnp.exp(-jnp.abs(x)))
    p_t = jnp.exp(-bce)
    loss = alpha * (1.0 - p_t) ** gamma * bce
    return jnp.mean(loss) if reduction == "mean" else jnp.sum(loss)


if __name__ == "__main__":
    key = jax.random.PRNGKey(0)
    k1, k2, k3, k4, k5, k6, k7, k8 = jax.random.split(key, 8)

    # 1) Primary check: NCHW inputs, same convention as the PyTorch module.
    B, C, H, W = 2, 4, 16, 16
    logits = jax.random.normal(k1, (B, C, H, W), dtype=jnp.float32)
    targets = (jax.random.uniform(k2, (B, C, H, W)) > 0.5).astype(jnp.float32)
    out = jax.block_until_ready(
        focal_loss(logits, targets, alpha=1.0, gamma=2.0, reduction="mean"))
    ref = _focal_loss_ref(logits, targets, alpha=1.0, gamma=2.0, reduction="mean")
    assert jnp.allclose(out, ref, rtol=2e-5, atol=1e-6), (out, ref)

    # 2) Lane-unaligned size -> single minimal pad path, 'sum' reduction.
    lg2 = jax.random.normal(k3, (2, 3, 17, 19), dtype=jnp.float32)
    tg2 = (jax.random.uniform(k4, (2, 3, 17, 19)) > 0.5).astype(jnp.float32)
    out2 = jax.block_until_ready(
        focal_loss(lg2, tg2, alpha=0.25, gamma=2.0, reduction="sum"))
    ref2 = _focal_loss_ref(lg2, tg2, alpha=0.25, gamma=2.0, reduction="sum")
    assert jnp.allclose(out2, ref2, rtol=2e-5, atol=1e-4), (out2, ref2)

    # 3) Zero-copy path with odd row count + bf16 pass-through + integer gamma=3.
    lg3 = jax.random.normal(k5, (2, 17, 64), dtype=jnp.float32).astype(jnp.bfloat16)
    tg3 = (jax.random.uniform(k6, (2, 17, 64)) > 0.5).astype(jnp.bfloat16)
    out3 = jax.block_until_ready(
        focal_loss(lg3, tg3, alpha=1.0, gamma=3.0, reduction="mean"))
    ref3 = _focal_loss_ref(lg3, tg3, alpha=1.0, gamma=3.0, reduction="mean")
    assert jnp.allclose(out3, ref3, rtol=2e-5, atol=1e-5), (out3, ref3)

    # 4) Multi-block accumulation across grid steps + small jnp row epilogue.
    lg4 = jax.random.normal(k7, (8, 8, 128, 144), dtype=jnp.float32)
    tg4 = (jax.random.uniform(k8, (8, 8, 128, 144)) > 0.5).astype(jnp.float32)
    out4 = jax.block_until_ready(
        focal_loss(lg4, tg4, alpha=1.0, gamma=2.0, reduction="mean"))
    ref4 = _focal_loss_ref(lg4, tg4, alpha=1.0, gamma=2.0, reduction="mean")
    assert jnp.allclose(out4, ref4, rtol=2e-5, atol=1e-6), (out4, ref4)

    print("KERNEL_OK")
</pallas_src>

<mosaic_0001>
module attributes {stable_mosaic.version = 11 : i64} {
  func.func @_focal_kernel(%arg0: i32, %arg1: i32, %arg2: memref<16x128xf32, #tpu.memory_space<vmem>>, %arg3: memref<16x128xf32, #tpu.memory_space<vmem>>, %arg4: memref<1x8x128xf32, #tpu.memory_space<vmem>>, %arg5: memref<16x128xf32, #tpu.memory_space<vmem>>) attributes {dimension_semantics = [#tpu.dimension_semantics<parallel>, #tpu.dimension_semantics<arbitrary>], iteration_bounds = array<i64: 1, 1>, scalar_prefetch = 0 : i64, scratch_operands = 1 : i64, tpu.core_type = #tpu.core_type<tc>, window_params = [{transform_indices = @transform_0, window_bounds = array<i64: 16, 128>}, {transform_indices = @transform_1, window_bounds = array<i64: 16, 128>}, {transform_indices = @transform_2, window_bounds = array<i64: 1, 8, 128>}]} {
    %c0_i32 = arith.constant 0 : i32
    %0 = arith.cmpi eq, %arg1, %c0_i32 : i32
    %1 = arith.extui %0 : i1 to i32
    %c0_i32_0 = arith.constant 0 : i32
    %2 = arith.cmpi ne, %1, %c0_i32_0 : i32
    scf.if %2 {
      %cst_14 = arith.constant 0.000000e+00 : f32
      %30 = vector.broadcast %cst_14 : f32 to vector<16x128xf32>
      %c0_15 = arith.constant 0 : index
      %c0_16 = arith.constant 0 : index
      %31 = vector.load %arg5[%c0_15, %c0_16] : memref<16x128xf32, #tpu.memory_space<vmem>>, vector<16x128xf32>
      tpu.vector_store %arg5[%c0_15, %c0_16], %30 {strides = array<i32>} : memref<16x128xf32, #tpu.memory_space<vmem>>, vector<16x128xf32>,
    } else {
    }
    %c0 = arith.constant 0 : index
    %c0_1 = arith.constant 0 : index
    %3 = vector.load %arg2[%c0, %c0_1] : memref<16x128xf32, #tpu.memory_space<vmem>>, vector<16x128xf32>
    %c0_2 = arith.constant 0 : index
    %c0_3 = arith.constant 0 : index
    %4 = vector.load %arg3[%c0_2, %c0_3] : memref<16x128xf32, #tpu.memory_space<vmem>>, vector<16x128xf32>
    %cst = arith.constant 0.000000e+00 : f32
    %5 = vector.broadcast %cst : f32 to vector<16x128xf32>
    %6 = arith.maximumf %3, %5 : vector<16x128xf32>
    %7 = arith.mulf %3, %4 : vector<16x128xf32>
    %8 = arith.subf %6, %7 : vector<16x128xf32>
    %9 = math.absf %3 : vector<16x128xf32>
    %cst_4 = arith.constant 0.000000e+00 : f32
    %10 = vector.broadcast %cst_4 : f32 to vector<16x128xf32>
    %11 = arith.subf %10, %9 : vector<16x128xf32>
    %12 = math.exp %11 : vector<16x128xf32>
    %13 = math.log1p %12 : vector<16x128xf32>
    %14 = arith.addf %8, %13 : vector<16x128xf32>
    %cst_5 = arith.constant 0.000000e+00 : f32
    %15 = vector.broadcast %cst_5 : f32 to vector<16x128xf32>
    %16 = arith.subf %15, %14 : vector<16x128xf32>
    %17 = math.exp %16 : vector<16x128xf32>
    %cst_6 = arith.constant 1.000000e+00 : f32
    %18 = vector.broadcast %cst_6 : f32 to vector<16x128xf32>
    %19 = arith.subf %18, %17 : vector<16x128xf32>
    %20 = arith.mulf %19, %19 : vector<16x128xf32>
    %cst_7 = arith.constant 1.000000e+00 : f32
    %21 = vector.broadcast %cst_7 : f32 to vector<16x128xf32>
    %22 = arith.mulf %21, %20 : vector<16x128xf32>
    %23 = arith.mulf %22, %14 : vector<16x128xf32>
    %c0_8 = arith.constant 0 : index
    %c0_9 = arith.constant 0 : index
    %24 = vector.load %arg5[%c0_8, %c0_9] : memref<16x128xf32, #tpu.memory_space<vmem>>, vector<16x128xf32>
    %25 = arith.addf %24, %23 : vector<16x128xf32>
    %c0_10 = arith.constant 0 : index
    %c0_11 = arith.constant 0 : index
    %26 = vector.load %arg5[%c0_10, %c0_11] : memref<16x128xf32, #tpu.memory_space<vmem>>, vector<16x128xf32>
    tpu.vector_store %arg5[%c0_10, %c0_11], %25 {strides = array<i32>} : memref<16x128xf32, #tpu.memory_space<vmem>>, vector<16x128xf32>,
    %c0_i32_12 = arith.constant 0 : i32
    %27 = arith.cmpi eq, %arg1, %c0_i32_12 : i32
    %28 = arith.extui %27 : i1 to i32
    %c0_i32_13 = arith.constant 0 : i32
    %29 = arith.cmpi ne, %28, %c0_i32_13 : i32
    scf.if %29 {
      %c0_14 = arith.constant 0 : index
      %c0_15 = arith.constant 0 : index
      %30 = vector.load %arg5[%c0_14, %c0_15] : memref<16x128xf32, #tpu.memory_space<vmem>>, vector<16x128xf32>
      %31 = vector.shape_cast %30 : vector<16x128xf32> to vector<2x8x128xf32>
      %cst_16 = arith.constant dense<0.000000e+00> : vector<8x128xf32>
      %32 = vector.multi_reduction <add>, %31, %cst_16 [0] : vector<2x8x128xf32> to vector<8x128xf32>
      %c0_17 = arith.constant 0 : index
      %c0_18 = arith.constant 0 : index
      %c0_19 = arith.constant 0 : index
      %33 = vector.load %arg4[%c0_17, %c0_18, %c0_19] : memref<1x8x128xf32, #tpu.memory_space<vmem>>, vector<1x8x128xf32>
      %34 = vector.shape_cast %33 : vector<1x8x128xf32> to vector<8x128xf32>
      %35 = vector.shape_cast %32 : vector<8x128xf32> to vector<1x8x128xf32>
      tpu.vector_store %arg4[%c0_17, %c0_18, %c0_19], %35 {strides = array<i32>} : memref<1x8x128xf32, #tpu.memory_space<vmem>>, vector<1x8x128xf32>,
    } else {
    }
    return
  }
  func.func @transform_0(%arg0: i32, %arg1: i32) -> (i32, i32) {
    %c1_i32 = arith.constant 1 : i32
    %0 = arith.muli %arg0, %c1_i32 : i32
    %1 = arith.addi %0, %arg1 : i32
    %c0_i32 = arith.constant 0 : i32
    %c0_i32_0 = arith.constant 0 : i32
    return %1, %c0_i32 : i32, i32
  }
  func.func @transform_1(%arg0: i32, %arg1: i32) -> (i32, i32) {
    %c1_i32 = arith.constant 1 : i32
    %0 = arith.muli %arg0, %c1_i32 : i32
    %1 = arith.addi %0, %arg1 : i32
    %c0_i32 = arith.constant 0 : i32
    %c0_i32_0 = arith.constant 0 : i32
    return %1, %c0_i32 : i32, i32
  }
  func.func @transform_2(%arg0: i32, %arg1: i32) -> (i32, i32, i32) {
    %c0_i32 = arith.constant 0 : i32
    %c0_i32_0 = arith.constant 0 : i32
    %c0_i32_1 = arith.constant 0 : i32
    return %arg0, %c0_i32, %c0_i32_0 : i32, i32, i32
  }
}

</mosaic_0001>

<llo_original>
// kernel: focal_loss.1
$region0: #{focal_loss.1}
  #allocation0 [shape = 'u32[]', space=smem, size = 0x4, offset = 0x4, fixed_abs, tag = 'smem constant byte address 0x4 - core index']
  #allocation1 [shape = 'u32[72,128]{1,0:T(1,128)}', space=vmem, size = 0x9000, scoped, tag = 'internal scratch']
  #allocation2 [shape = 'f32[16,128]{1,0:T(8,128)}', space=vmem, size = 0x2000, scoped, tag = 'scratch operand']
  %s0 = inlined_call_operand.vmem [shape: f32[16,128], index: 0, kind: input, shape index: {}]
  %s1 = inlined_call_operand.vmem [shape: f32[16,128], index: 1, kind: input, shape index: {}]
  %s2 = inlined_call_operand.vmem [shape: f32[1,8,128], index: 2, kind: output, shape index: {}]
  %s3 = sld [smem:[#allocation0]]
  $region26: #{focal_loss.1} parent=0
    _
  %s5 = ssub.s32 1, %s3
  %s6 = scalar_select 0, %s5, %s3
  // Predicated region
  $region2: #{focal_loss.1} parent=0 // pred_check
    _
  $region3: #{focal_loss.1} parent=0 // pred_check_branch
    %8 = sbr.rel (0) target = $region5
  $region4: #{focal_loss.1} parent=0 // pred_region
    %s9 = sadd.s32 0, 0
    %s10 = smul.u32 2, %s9
    %p11 = scmp.lt.s32.totalorder %s10, 1
    %s12 = scalar_select %p11, %s10, 1
    %s13 = smul.addr %s12, 8
    %s14 = scalar_lea.vmem %s0, %s13
    %s15 = sadd.s32 0, 0
    %s16 = smul.u32 2, %s15
  $region5: #{focal_loss.1} parent=0 // pred_fallthru
    _
  // Predicated region
  $region6: #{focal_loss.1} parent=0 // pred_check
    _
  $region7: #{focal_loss.1} parent=0 // pred_check_branch
    %18 = sbr.rel (0) target = $region9
  $region8: #{focal_loss.1} parent=0 // pred_region
    %s19 = sadd.s32 0, 0
    %s20 = smul.u32 2, %s19
    %p21 = scmp.lt.s32.totalorder %s20, 1
    %s22 = scalar_select %p21, %s20, 1
    %s23 = smul.addr %s22, 8
    %s24 = scalar_lea.vmem %s1, %s23
    %s25 = sadd.s32 0, 0
    %s26 = smul.u32 2, %s25
  $region9: #{focal_loss.1} parent=0 // pred_fallthru
    _
  %s27 = sadd.s32 0, 0
  %s28 = smul.u32 2, %s27
  %p29 = scmp.lt.s32.totalorder %s28, 1
  %s30 = scalar_select %p29, %s28, 1
  %s31 = smul.addr %s30, 8
  %s32 = scalar_lea.vmem %s0, %s31
  %s33 = sadd.s32 0, 0
  %s34 = smul.u32 2, %s33
  %p35 = scmp.lt.s32.totalorder %s34, 1
  %s36 = scalar_select %p35, %s34, 1
  %s37 = smul.addr %s36, 8
  %s38 = scalar_lea.vmem %s1, %s37
  %s39 = sadd.s32 0, 0
  %s40 = smul.u32 2, %s39
  %p41 = scmp.lt.s32.totalorder %s40, 1
  %s42 = scalar_select %p41, %s40, 1
  %s43 = smul.addr %s42, 8
  %s44 = scalar_lea.vmem %s0, %s43
  %s45 = sadd.s32 0, 0
  %s46 = smul.u32 2, %s45
  %s47 = sadd.s32 0, 0
  %s48 = smul.u32 2, %s47
  %p49 = scmp.lt.s32.totalorder %s48, 1
  %s50 = scalar_select %p49, %s48, 1
  %s51 = smul.addr %s50, 8
  %s52 = scalar_lea.vmem %s1, %s51
  %s53 = sadd.s32 0, 0
  %s54 = smul.u32 2, %s53
  %p55 = scmp.eq.s32.totalorder 0, 0
  // Predicated region
  $region10: #{focal_loss.1} parent=0 // pred_check
    %p56 = pneg %p55
  $region11: #{focal_loss.1} parent=0 // pred_check_branch
    %58 = sbr.rel (%p56) target = $region13
  $region12: #{focal_loss.1} parent=0 // pred_region
    %59 = vst [vmem:[#allocation2] sm:$0xff] 0.0
    %60 = vst [vmem:[#allocation2 + $0x8] sm:$0xff] 0.0
  $region13: #{focal_loss.1} parent=0 // pred_fallthru
    _
  %v61 = vld [vmem:[%s44] sm:$0xff]
  %v62 = vld [vmem:[%s44 + $0x8] sm:$0xff]
  %v63 = vld [vmem:[%s52] sm:$0xff]
  %v64 = vld [vmem:[%s52 + $0x8] sm:$0xff]
  %v65 = vmax.f32 %v61, 0.0
  %v66 = vmax.f32 %v62, 0.0
  %v67 = vmul.f32 %v61, %v63
  %v68 = vmul.f32 %v62, %v64
  %v69 = vsub.f32 %v65, %v67
  %v70 = vsub.f32 %v66, %v68
  %v71 = vand.u32 2147483647, %v61
  %v72 = vand.u32 2147483647, %v62
  %v73 = vsub.f32 0.0, %v71
  %v74 = vsub.f32 0.0, %v72
  %v75 = vmul.f32 %v73, 1.442695
  %v76 = vpow.pop %v75
  %v77 = vmul.f32 %v74, 1.442695
  %v78 = vpow.pop %v77
  %v79 = vadd.f32 %v76, 1.0
  %v80 = vlog2.pop %v79
  %v81 = vmul.f32 %v80, 0.6931472
  %v82 = vmul.f32 -0.5, %v76
  %v83 = vadd.f32 %v82, 1.0
  %v84 = vmul.f32 %v83, %v76
  %v85 = vand.u32 2147483647, %v76
  %vm86 = vcmp.lt.f32.partialorder %v85, 0.0004427343
  %v87 = vsel %vm86, %v84, %v81
  %v88 = vadd.f32 %v78, 1.0
  %v89 = vlog2.pop %v88
  %v90 = vmul.f32 %v89, 0.6931472
  %v91 = vmul.f32 -0.5, %v78
  %v92 = vadd.f32 %v91, 1.0
  %v93 = vmul.f32 %v92, %v78
  %v94 = vand.u32 2147483647, %v78
  %vm95 = vcmp.lt.f32.partialorder %v94, 0.0004427343
  %v96 = vsel %vm95, %v93, %v90
  %v97 = vadd.f32 %v69, %v87
  %v98 = vadd.f32 %v70, %v96
  %v99 = vsub.f32 0.0, %v97
  %v100 = vsub.f32 0.0, %v98
  %v101 = vmul.f32 %v99, 1.442695
  %v102 = vpow.pop %v101
  %v103 = vmul.f32 %v100, 1.442695
  %v104 = vpow.pop %v103
  %v105 = vsub.f32 1.0, %v102
  %v106 = vsub.f32 1.0, %v104
  %v107 = vmul.f32 %v105, %v105
  %v108 = vmul.f32 %v106, %v106
  %v109 = vmul.f32 %v107, %v97
  %v110 = vmul.f32 %v108, %v98
  %v111 = vld [vmem:[#allocation2] sm:$0xff]
  %v112 = vld [vmem:[#allocation2 + $0x8] sm:$0xff]
  %v113 = vadd.f32 %v111, %v109
  %v114 = vadd.f32 %v112, %v110
  %115 = vst [vmem:[#allocation2] sm:$0xff] %v113
  %116 = vst [vmem:[#allocation2 + $0x8] sm:$0xff] %v114
  // Predicated region
  $region14: #{focal_loss.1} parent=0 // pred_check
    %p117 = pneg %p55
  $region15: #{focal_loss.1} parent=0 // pred_check_branch
    %119 = sbr.rel (%p117) target = $region17
  $region16: #{focal_loss.1} parent=0 // pred_region
    %v120 = vld [vmem:[#allocation2] sm:$0xff]
    %v121 = vld [vmem:[#allocation2 + $0x8] sm:$0xff]
    %v122 = vadd.f32 %v120, %v121
    %123 = vst [vmem:[%s2] sm:$0xff] %v122
  $region17: #{focal_loss.1} parent=0 // pred_fallthru
    _
  // Predicated region
  $region18: #{focal_loss.1} parent=0 // pred_check
    _
  $region19: #{focal_loss.1} parent=0 // pred_check_branch
    %125 = sbr.rel (0) target = $region21
  $region20: #{focal_loss.1} parent=0 // pred_region
    _
  $region21: #{focal_loss.1} parent=0 // pred_fallthru
    _
  // Predicated region
  $region22: #{focal_loss.1} parent=0 // pred_check
    _
  $region23: #{focal_loss.1} parent=0 // pred_check_branch
    %127 = sbr.rel (0) target = $region25
  $region24: #{focal_loss.1} parent=0 // pred_region
    _
  $region25: #{focal_loss.1} parent=0 // pred_fallthru
    _

</llo_original>
